<compile_context>
chip_gen: v6e
topology: v6e:2x2x1
jax: 0.10.0
libtpu: 0.0.40
codegen_flags: <defaults>
</compile_context>

<pallas_src>
import jax
import jax.numpy as jnp
from jax.experimental import pallas as pl
from jax.experimental.pallas import tpu as pltpu


TILE_M = 512  # rows (N*H*W) per grid step; 512-row tiles sit near the HBM roofline.


def _round_up(x, m):
    return ((x + m - 1) // m) * m


# ----------------------------- Pallas kernels ------------------------------ #

def _matmul_bias_kernel(x_ref, w_ref, b_ref, o_ref):
    # (TILE_M, K) @ (K, Cout) + bias ; bf16 inputs, f32 accumulation on the MXU.
    o_ref[...] = (
        jnp.dot(x_ref[...], w_ref[...], preferred_element_type=jnp.float32)
        + b_ref[...]
    ).astype(o_ref.dtype)


def _matmul_bias_add_kernel(x_ref, u_ref, w_ref, b_ref, o_ref):
    # Same as above plus fused elementwise add of the upsampled coarser level.
    o_ref[...] = (
        jnp.dot(x_ref[...], w_ref[...], preferred_element_type=jnp.float32)
        + b_ref[...]
        + u_ref[...]
    ).astype(o_ref.dtype)


# ------------------------------ Pallas wrappers ----------------------------- #

def _tiled_matmul_bias(x2d, w, b2d, add2d=None, tile_m=TILE_M):
    """out = x2d @ w + b2d (+ add2d), tiled over the M (row) axis.

    x2d: (M, K) bf16, w: (K, Cout) bf16, b2d: (1, Cout) f32,
    add2d: optional (M, Cout) f32.  Returns (M, Cout) f32.
    """
    M, K = x2d.shape
    Cout = w.shape[1]

    tm = min(tile_m, _round_up(M, 8))
    Mp = _round_up(M, tm)
    if Mp != M:
        x2d = jnp.pad(x2d, ((0, Mp - M), (0, 0)))
        if add2d is not None:
            add2d = jnp.pad(add2d, ((0, Mp - M), (0, 0)))
    grid = (Mp // tm,)

    x_spec = pl.BlockSpec((tm, K), lambda i: (i, 0))
    u_spec = pl.BlockSpec((tm, Cout), lambda i: (i, 0))
    w_spec = pl.BlockSpec((K, Cout), lambda i: (0, 0))
    b_spec = pl.BlockSpec((1, Cout), lambda i: (0, 0))
    o_spec = pl.BlockSpec((tm, Cout), lambda i: (i, 0))

    if add2d is None:
        kernel = _matmul_bias_kernel
        in_specs = [x_spec, w_spec, b_spec]
        args = (x2d, w, b2d)
    else:
        kernel = _matmul_bias_add_kernel
        in_specs = [x_spec, u_spec, w_spec, b_spec]
        args = (x2d, add2d, w, b2d)

    # VMEM sizing (double-buffered input/output blocks) + HBM-byte cost hint.
    xb = x2d.dtype.itemsize
    wb = w.dtype.itemsize
    block_bytes = 2 * tm * K * xb + 2 * tm * Cout * 4 + K * Cout * wb + Cout * 4
    if add2d is not None:
        block_bytes += 2 * tm * Cout * 4
    # Keep well under v7x's 64 MiB physical VMEM per TensorCore.
    vmem_limit = int(min(max(4 * block_bytes, 16 * 1024 * 1024), 48 * 1024 * 1024))
    bytes_accessed = Mp * K * xb + K * Cout * wb + Cout * 4 + Mp * Cout * 4
    if add2d is not None:
        bytes_accessed += Mp * Cout * 4

    out = pl.pallas_call(
        kernel,
        out_shape=jax.ShapeDtypeStruct((Mp, Cout), jnp.float32),
        grid=grid,
        in_specs=in_specs,
        out_specs=o_spec,
        compiler_params=pltpu.CompilerParams(
            dimension_semantics=("parallel",),
            vmem_limit_bytes=vmem_limit,
        ),
        cost_estimate=pl.CostEstimate(
            flops=2 * Mp * K * Cout,
            transcendentals=0,
            bytes_accessed=bytes_accessed,
        ),
    )(*args)
    return out[:M] if Mp != M else out


def lateral_conv(x_nhwc, w, b2d, add_nhwc=None, tile_m=TILE_M):
    """1x1 conv (+ optional fused top-down add). Returns (N, H, W, Cout) f32."""
    N, H, W, Cin = x_nhwc.shape
    x2d = x_nhwc.reshape(N * H * W, Cin).astype(jnp.bfloat16)
    add2d = None if add_nhwc is None else add_nhwc.reshape(N * H * W, -1)
    y = _tiled_matmul_bias(x2d, w, b2d, add2d=add2d, tile_m=tile_m)
    return y.reshape(N, H, W, -1)


def conv3x3_same(x_nhwc, w9k, b2d, tile_m=TILE_M):
    """3x3 conv, stride 1, pad 1, as ONE (M, 9*Cin) x (9*Cin, Cout) matmul.

    x_nhwc: (N, H, W, Cin), w9k: (9*Cin, Cout) with (ky, kx, ci) row order,
    b2d: (1, Cout).  Returns (N, H, W, Cout) f32.
    """
    N, H, W, Cin = x_nhwc.shape
    M = N * H * W
    xp = jnp.pad(x_nhwc.astype(jnp.bfloat16), ((0, 0), (1, 1), (1, 1), (0, 0)))
    # Single channels-last im2col buffer (M, 9*Cin): one MXU matmul with K=9*Cin.
    # TODO(synk): build the 9 shifted taps inside the kernel per M-tile (halo row
    # DMA + in-VMEM W shifts) to eliminate this im2col HBM round trip entirely.
    taps = jnp.concatenate(
        [xp[:, ky:ky + H, kx:kx + W, :].reshape(M, Cin)
         for ky in range(3) for kx in range(3)],
        axis=1,
    )
    out2d = _tiled_matmul_bias(taps, w9k, b2d, tile_m=tile_m)
    return out2d.reshape(N, H, W, -1)


def upsample_nearest_nhwc(x, out_h, out_w):
    """Matches F.interpolate(mode='nearest'): src = floor(dst * in / out)."""
    N, H, W, C = x.shape
    hi = (jnp.arange(out_h) * H) // out_h
    wi = (jnp.arange(out_w) * W) // out_w
    return x[:, hi][:, :, wi]


# ------------------------------- FPN forward ------------------------------- #

def fpn_forward(features_nchw, params):
    """features_nchw: list of (N, Ci, Hi, Wi). Returns list of (N, Cout, Hi, Wi)."""
    feats = [jnp.transpose(f, (0, 2, 3, 1)) for f in features_nchw]  # -> NHWC
    L = len(feats)

    # Top-down pathway with "+ upsample" fused into the lateral 1x1 conv kernel.
    fpn = [None] * L
    for i in range(L - 1, -1, -1):
        w, b = params["lateral"][i]
        if i == L - 1:
            fpn[i] = lateral_conv(feats[i], w, b)
        else:
            N, H, W, _ = feats[i].shape
            up = upsample_nearest_nhwc(fpn[i + 1], H, W)
            fpn[i] = lateral_conv(feats[i], w, b, add_nhwc=up)

    # Smooth 3x3 convs (single-matmul formulation).
    outs = [conv3x3_same(f, w9, b) for f, (w9, b) in zip(fpn, params["smooth"])]

    # Back to NCHW to match PyTorch convention.
    return [jnp.transpose(o, (0, 3, 1, 2)) for o in outs]


# --------------------------- Pure-JAX reference ----------------------------- #

def _conv_ref(x_nchw, w_oihw, b, pad):
    y = jax.lax.conv_general_dilated(
        x_nchw, w_oihw, window_strides=(1, 1), padding=pad,
        dimension_numbers=("NCHW", "OIHW", "NCHW"),
    )
    return y + b[None, :, None, None]


def fpn_forward_ref(features_nchw, torch_params):
    lat_w, lat_b, sm_w, sm_b = torch_params
    laterals = [
        _conv_ref(f, w, b, [(0, 0), (0, 0)])
        for f, w, b in zip(features_nchw, lat_w, lat_b)
    ]
    fpn = [None] * len(laterals)
    fpn[-1] = laterals[-1]
    for i in range(len(laterals) - 2, -1, -1):
        _, _, H, W = laterals[i].shape
        _, _, h, w = fpn[i + 1].shape
        hi = (jnp.arange(H) * h) // H
        wi = (jnp.arange(W) * w) // W
        up = fpn[i + 1][:, :, hi][:, :, :, wi]
        fpn[i] = laterals[i] + up
    return [
        _conv_ref(f, w, b, [(1, 1), (1, 1)])
        for f, w, b in zip(fpn, sm_w, sm_b)
    ]


# ----------------------------------- main ----------------------------------- #

if __name__ == "__main__":
    key = jax.random.PRNGKey(0)

    # Small FPN config: 4 pyramid levels.
    in_channels_list = [8, 16, 32, 64]
    out_channels = 32
    N = 2
    spatial = [32, 16, 8, 4]   # M per level: 2048, 512, 128, 32 -> exercises tiling

    # Deterministic "PyTorch-shaped" parameters.
    lat_w, lat_b, sm_w, sm_b = [], [], [], []
    for cin in in_channels_list:
        key, k1, k2 = jax.random.split(key, 3)
        lat_w.append(0.1 * jax.random.normal(k1, (out_channels, cin, 1, 1), jnp.float32))
        lat_b.append(0.1 * jax.random.normal(k2, (out_channels,), jnp.float32))
    for _ in in_channels_list:
        key, k1, k2 = jax.random.split(key, 3)
        sm_w.append(0.1 * jax.random.normal(k1, (out_channels, out_channels, 3, 3), jnp.float32))
        sm_b.append(0.1 * jax.random.normal(k2, (out_channels,), jnp.float32))

    # Convert to kernel-friendly layouts (bf16 matmul operands, f32 bias).
    params = {
        "lateral": [
            (w[:, :, 0, 0].T.astype(jnp.bfloat16), b[None, :])      # (Cin, Cout), (1, Cout)
            for w, b in zip(lat_w, lat_b)
        ],
        "smooth": [
            (jnp.transpose(w, (2, 3, 1, 0))                          # (ky, kx, ci, co)
               .reshape(9 * out_channels, out_channels)
               .astype(jnp.bfloat16),
             b[None, :])
            for w, b in zip(sm_w, sm_b)
        ],
    }

    # Deterministic input features (NCHW, like PyTorch).
    features = []
    for cin, s in zip(in_channels_list, spatial):
        key, k = jax.random.split(key)
        features.append(jax.random.normal(k, (N, cin, s, s), jnp.float32))

    outs = fpn_forward(features, params)
    outs = [jax.block_until_ready(o) for o in outs]

    refs = fpn_forward_ref(features, (lat_w, lat_b, sm_w, sm_b))
    for o, r in zip(outs, refs):
        assert o.shape == r.shape, (o.shape, r.shape)
        assert jnp.allclose(o, r, rtol=5e-2, atol=5e-2), float(jnp.max(jnp.abs(o - r)))

    print("KERNEL_OK")
</pallas_src>

<mosaic_0001>
module attributes {stable_mosaic.version = 11 : i64} {
  func.func @_matmul_bias_kernel(%arg0: i32, %arg1: memref<32x64xbf16, #tpu.memory_space<vmem>>, %arg2: memref<64x32xbf16, #tpu.memory_space<vmem>>, %arg3: memref<1x32xf32, #tpu.memory_space<vmem>>, %arg4: memref<32x32xf32, #tpu.memory_space<vmem>>) attributes {dimension_semantics = [#tpu.dimension_semantics<parallel>], iteration_bounds = array<i64: 1>, scalar_prefetch = 0 : i64, scratch_operands = 0 : i64, tpu.core_type = #tpu.core_type<tc>, window_params = [{transform_indices = @transform_0, window_bounds = array<i64: 32, 64>}, {pipeline_mode = #tpu.pipeline_mode<synchronous>, transform_indices = @transform_1, window_bounds = array<i64: 64, 32>}, {pipeline_mode = #tpu.pipeline_mode<synchronous>, transform_indices = @transform_2, window_bounds = array<i64: 1, 32>}, {transform_indices = @transform_3, window_bounds = array<i64: 32, 32>}]} {
    %c0 = arith.constant 0 : index
    %c0_0 = arith.constant 0 : index
    %0 = vector.load %arg1[%c0, %c0_0] : memref<32x64xbf16, #tpu.memory_space<vmem>>, vector<32x64xbf16>
    %c0_1 = arith.constant 0 : index
    %c0_2 = arith.constant 0 : index
    %1 = vector.load %arg2[%c0_1, %c0_2] : memref<64x32xbf16, #tpu.memory_space<vmem>>, vector<64x32xbf16>
    %cst = arith.constant dense<0.000000e+00> : vector<32x32xf32>
    %2 = tpu.matmul %0, %1, %cst {dimension_numbers = #tpu.dot_dimension_numbers<[1], [0], [0], [1], [0, 0, 1, 1], [], []>} : vector<32x64xbf16>, vector<64x32xbf16>, vector<32x32xf32> -> vector<32x32xf32>
    %c0_3 = arith.constant 0 : index
    %c0_4 = arith.constant 0 : index
    %3 = vector.load %arg3[%c0_3, %c0_4] : memref<1x32xf32, #tpu.memory_space<vmem>>, vector<1x32xf32>
    %4 = vector.broadcast %3 : vector<1x32xf32> to vector<32x32xf32>
    %5 = arith.addf %2, %4 : vector<32x32xf32>
    %c0_5 = arith.constant 0 : index
    %c0_6 = arith.constant 0 : index
    %6 = vector.load %arg4[%c0_5, %c0_6] : memref<32x32xf32, #tpu.memory_space<vmem>>, vector<32x32xf32>
    tpu.vector_store %arg4[%c0_5, %c0_6], %5 {strides = array<i32>} : memref<32x32xf32, #tpu.memory_space<vmem>>, vector<32x32xf32>,
    return
  }
  func.func @transform_0(%arg0: i32) -> (i32, i32) {
    %c0_i32 = arith.constant 0 : i32
    %c0_i32_0 = arith.constant 0 : i32
    return %arg0, %c0_i32 : i32, i32
  }
  func.func @transform_1(%arg0: i32) -> (i32, i32) {
    %c0_i32 = arith.constant 0 : i32
    %c0_i32_0 = arith.constant 0 : i32
    %c0_i32_1 = arith.constant 0 : i32
    return %c0_i32, %c0_i32_0 : i32, i32
  }
  func.func @transform_2(%arg0: i32) -> (i32, i32) {
    %c0_i32 = arith.constant 0 : i32
    %c0_i32_0 = arith.constant 0 : i32
    %c0_i32_1 = arith.constant 0 : i32
    return %c0_i32, %c0_i32_0 : i32, i32
  }
  func.func @transform_3(%arg0: i32) -> (i32, i32) {
    %c0_i32 = arith.constant 0 : i32
    %c0_i32_0 = arith.constant 0 : i32
    return %arg0, %c0_i32 : i32, i32
  }
}

</mosaic_0001>

<llo_original>
// kernel: tpu_custom_call.1
$region0: #{tpu_custom_call.1}
  #allocation0 [shape = 'u32[]', space=smem, size = 0x4, offset = 0x4, fixed_abs, tag = 'smem constant byte address 0x4 - core index']
  #allocation1 [shape = 'u32[144,128]{1,0:T(1,128)}', space=vmem, size = 0x12000, scoped, tag = 'internal scratch']
  %s0 = inlined_call_operand.vmem [shape: bf16[32,64], index: 0, kind: input, shape index: {}]
  %s1 = inlined_call_operand.vmem [shape: bf16[64,32], index: 1, kind: input, shape index: {}]
  %s2 = inlined_call_operand.vmem [shape: f32[1,32], index: 2, kind: input, shape index: {}]
  %s3 = inlined_call_operand.hbm [shape: f32[32,32], index: 3, kind: output, shape index: {}]
  %s4 = sld [smem:[#allocation0]]
  $region22: #{tpu_custom_call.1} parent=0
    _
  %s6 = ssub.s32 1, %s4
  %s7 = scalar_select 0, %s6, %s4
  $region1: #{tpu_custom_call.1} parent=0
    #allocation2 [shape = 'u8[16384]{0}', space=vmem, size = 0x4000, scoped, tag = 'output window, operand 0, single buffered']
    #allocation3 [shape = 's32[1]{0}', space=sflag, size = 0x4, scoped, tag = 'scoped memory for tpu_custom_call.1']
    %8 = vsyncpa [#allocation3], 0
    // Predicated region
    $region2: #{tpu_custom_call.1} parent=1 // pred_check
      _
    $region3: #{tpu_custom_call.1} parent=1 // pred_check_branch
      %10 = sbr.rel (0) target = $region5
    $region4: #{tpu_custom_call.1} parent=1 // pred_region
      _
    $region5: #{tpu_custom_call.1} parent=1 // pred_fallthru
      _
    // Predicated region
    $region6: #{tpu_custom_call.1} parent=1 // pred_check
      _
    $region7: #{tpu_custom_call.1} parent=1 // pred_check_branch
      %12 = sbr.rel (0) target = $region9
    $region8: #{tpu_custom_call.1} parent=1 // pred_region
      _
    $region9: #{tpu_custom_call.1} parent=1 // pred_fallthru
      _
    // Predicated region
    $region10: #{tpu_custom_call.1} parent=1 // pred_check
      _
    $region11: #{tpu_custom_call.1} parent=1 // pred_check_branch
      %14 = sbr.rel (0) target = $region13
    $region12: #{tpu_custom_call.1} parent=1 // pred_region
      _
    $region13: #{tpu_custom_call.1} parent=1 // pred_fallthru
      _
    %v16 = vld [vmem:[%s0] sm:$0xf]
    %v17 = vld [vmem:[%s0 + $0x4] sm:$0xf]
    %v18 = vld [vmem:[%s0 + $0x8] sm:$0xf]
    %v19 = vld [vmem:[%s0 + $0xc] sm:$0xf]
    %v20 = vld [vmem:[%s1] sm:$0xf]
    %v21 = vld [vmem:[%s1 + $0x4] sm:$0xf]
    %v22 = vld [vmem:[%s1 + $0x8] sm:$0xf]
    %v23 = vld [vmem:[%s1 + $0xc] sm:$0xf]
    %v24 = vld [vmem:[%s1 + $0x10] sm:$0xf]
    %v25 = vld [vmem:[%s1 + $0x14] sm:$0xf]
    %v26 = vld [vmem:[%s1 + $0x18] sm:$0xf]
    %v27 = vld [vmem:[%s1 + $0x1c] sm:$0xf]
    %v28 = vld [vmem:[%s2] sm:$0x1]
    %v30 = vlaneseq
    %v31 = vshrl.u32 %v30, 7
    %v32 = vsub.s32 0, %v31
    %v33 = vrot.slane %v28, %v32
    %v39 = vunpack.c.l.b16 %v16
    %v40 = vunpack.c.l.b16 %v17
    %v41 = vunpack.c.l.b16 %v18
    %v42 = vunpack.c.l.b16 %v19
    %v43 = vpack.c.b16 %v40, %v39
    %v44 = vpack.c.b16 %v42, %v41
    %v53 = vunpack.c.l.b16 %v20
    %v54 = vunpack.c.l.b16 %v21
    %v55 = vunpack.c.l.b16 %v22
    %v56 = vunpack.c.l.b16 %v23
    %v57 = vunpack.c.l.b16 %v24
    %v58 = vunpack.c.l.b16 %v25
    %v59 = vunpack.c.l.b16 %v26
    %v60 = vunpack.c.l.b16 %v27
    %v61 = vpack.c.b16 %v54, %v53
    %v62 = vpack.c.b16 %v56, %v55
    %v63 = vpack.c.b16 %v58, %v57
    %v64 = vpack.c.b16 %v60, %v59
    %vm69 = vcmask 523264
    %v71 = vsel %vm69, %v43, 0
    %v74 = vsel %vm69, %v44, 0
    %76 = vmatprep.subr.bf16.mxu0 0
    %77 = vmatpush1.bf16.msra.mxu0 0
    %78 = vmatprep.subr.bf16.mxu0 0
    %79 = vmatpush1.bf16.msra.mxu0 0
    %80 = vmatprep.subr.bf16.mxu0 0
    %81 = vmatpush1.bf16.msra.mxu0 0
    %82 = vmatprep.subr.bf16.mxu0 0
    %83 = vmatpush1.bf16.msra.mxu0 0
    %84 = vmatprep.subr.bf16.mxu0 0
    %85 = vmatpush1.bf16.msra.mxu0 %v64
    %86 = vmatprep.subr.bf16.mxu0 0
    %87 = vmatpush1.bf16.msra.mxu0 %v63
    %88 = vmatprep.subr.bf16.mxu0 0
    %89 = vmatpush1.bf16.msra.mxu0 %v62
    %90 = vmatprep.subr.bf16.mxu0 0
    %91 = vmatpush1.bf16.msra.mxu0 %v61
    %92 = vmatprep.subr.bf16.mxu0 0
    %93 = vmatpush2.bf16.msra.mxu0 0
    %94 = vmatprep.subr.bf16.mxu0 0
    %95 = vmatpush2.bf16.msra.mxu0 0
    %96 = vmatprep.subr.bf16.mxu0 0
    %97 = vmatpush2.bf16.msra.mxu0 0
    %98 = vmatprep.subr.bf16.mxu0 0
    %99 = vmatpush2.bf16.msra.mxu0 0
    %100 = vmatprep.subr.bf16.mxu0 0
    %101 = vmatpush2.bf16.msra.mxu0 0
    %102 = vmatprep.subr.bf16.mxu0 0
    %103 = vmatpush2.bf16.msra.mxu0 0
    %104 = vmatprep.subr.bf16.mxu0 0
    %105 = vmatpush2.bf16.msra.mxu0 0
    %106 = vmatprep.subr.bf16.mxu0 0
    %107 = vmatpush2.bf16.msra.mxu0 0
    %108 = vmatprep.mubr.bf16.mxu0 0
    %109 = vmatmul.mubr.bf16.gmra.mxu0 %v71
    %v110 = vpop.f32.mrf.mxu0
    %v111 = vadd.f32 %v33, %v110
    %v112 = vpop.f32.mrf.mxu0
    %v113 = vpop.f32.mrf.mxu0
    %v114 = vadd.f32 %v33, %v113
    %v115 = vpop.f32.mrf.mxu0
    %116 = vmatprep.mubr.bf16.mxu0 0
    %117 = vmatmul.mubr.bf16.gmra.mxu0 %v74
    %v118 = vpop.f32.mrf.mxu0
    %v119 = vadd.f32 %v33, %v118
    %v120 = vpop.f32.mrf.mxu0
    %v121 = vpop.f32.mrf.mxu0
    %v122 = vadd.f32 %v33, %v121
    %v123 = vpop.f32.mrf.mxu0
    %124 = vdwg.mxu0
    %vm125 = vcmask 261120
    %126 = vst.msk [vmem:[#allocation2] sm:$0xff] %vm125, %v111
    %127 = vst.msk [vmem:[#allocation2 + $0x8] sm:$0xff] %vm125, %v114
    %128 = vst.msk [vmem:[#allocation2 + $0x10] sm:$0xff] %vm125, %v119
    %129 = vst.msk [vmem:[#allocation2 + $0x18] sm:$0xff] %vm125, %v122
    // Predicated region
    $region14: #{tpu_custom_call.1} parent=1 // pred_check
      _
    $region15: #{tpu_custom_call.1} parent=1 // pred_check_branch
      %131 = sbr.rel (0) target = $region17
    $region16: #{tpu_custom_call.1} parent=1 // pred_region
      %s133 = ssub.s32 512, 512
      %134 = vsyncadd [#allocation3], %s133
      %s135 = sshll.u32 [#allocation2], 4
      %s136 = int_to_ptr.vmem [resolvable:$true] %s135
      %141 = dma.vmem_to_hbm [thread:$0]  %s136, 512, %s3, [#allocation3], 128, 128, 8
    $region17: #{tpu_custom_call.1} parent=1 // pred_fallthru
      _
    // Predicated region
    $region18: #{tpu_custom_call.1} parent=1 // pred_check
      _
    $region19: #{tpu_custom_call.1} parent=1 // pred_check_branch
      %143 = sbr.rel (0) target = $region21
    $region20: #{tpu_custom_call.1} parent=1 // pred_region
      %144 = dma.done [#allocation3], 512
    $region21: #{tpu_custom_call.1} parent=1 // pred_fallthru
      _
    %145 = vsyncpa [#allocation3], 1

</llo_original>
